<compile_context>
chip_gen: v7x
topology: tpu7x:2x2x1
jax: 0.10.0
libtpu: 0.0.40
codegen_flags: <defaults>
</compile_context>

<pallas_src>
import math
from functools import partial

import jax
import jax.numpy as jnp
from jax.experimental import pallas as pl
from jax.experimental.pallas import tpu as pltpu


def _round_up(x, m):
    return ((x + m - 1) // m) * m


def _make_stack_kernel(hp_sizes):
    """Build a kernel that runs the whole LSTM stack on one batch tile.

    Refs: (x_ref, w0_ref, b0_ref, w1_ref, b1_ref, ..., out_ref)
      x_ref  : (TB, D_in)          f32
      wL_ref : (D_inL, 3*HpL)      f32   gate order i|g|o, each gate padded
                                         to a 128-lane-aligned slot of HpL
      bL_ref : (1, 3*HpL)          f32   b_ih + b_hh (i|g|o), same padding
      out_ref: (TB, Hp_last)       f32   lane-dense (multiple of 128)
    """
    n_layers = len(hp_sizes)

    def kernel(*refs):
        x_ref = refs[0]
        out_ref = refs[-1]
        h = x_ref[...]
        for li in range(n_layers):
            Hp = hp_sizes[li]
            w_ref = refs[1 + 2 * li]
            b_ref = refs[2 + 2 * li]
            # MXU matmul: (TB, D_in) @ (D_in, 3*Hp) -> (TB, 3*Hp), f32 acc.
            z = jnp.dot(h, w_ref[...], preferred_element_type=jnp.float32)
            z = z + b_ref[...]
            # 128-lane-aligned gate slabs (no cross-lane extraction).
            i_g = jax.nn.sigmoid(z[:, 0 * Hp:1 * Hp])
            g_g = jnp.tanh(z[:, 1 * Hp:2 * Hp])
            o_g = jax.nn.sigmoid(z[:, 2 * Hp:3 * Hp])
            # c = i*g (f gate is dead: c0 == 0); h = o * tanh(c).
            # Padded columns: sigmoid(0)*tanh(sigmoid(0)*tanh(0)) == 0, so h
            # stays exactly zero there and feeds zeros into the next layer.
            h = o_g * jnp.tanh(i_g * g_g)
        out_ref[...] = h.astype(out_ref.dtype)

    return kernel


@partial(jax.jit, static_argnums=2)
def lstm_forward(x, fused_params, hidden_sizes):
    """Full module forward: x (samples, 1, length) -> (samples, units[-1]).

    `fused_params` is a list of dicts {"w": (D_in, 3*Hp), "b": (1, 3*Hp)}
    produced by `prepare_fused_params`; `hidden_sizes` is the static tuple of
    un-padded hidden sizes (only the last one is needed, for the final slice).
    """
    assert x.ndim == 3 and x.shape[1] == 1
    h0 = x[:, 0, :].astype(jnp.float32)      # squeeze seq_len==1 -> (B, D_in)
    B, D_in = h0.shape

    hp_sizes = tuple(int(p["w"].shape[1]) // 3 for p in fused_params)
    Hp_last = hp_sizes[-1]
    H_last = hidden_sizes[-1]

    # Batch tiling: multiple of 8 sublanes so blocks satisfy the (8, 128)
    # rule; cap the tile at 256 rows so large batches pipeline the x DMA and
    # shard across TensorCores. Pad B so the grid divides evenly.
    tb = _round_up(B, 8) if B <= 256 else 256
    Bp = _round_up(B, tb)
    xp = h0 if Bp == B else jnp.pad(h0, ((0, Bp - B), (0, 0)))

    kernel = _make_stack_kernel(hp_sizes)

    in_specs = [pl.BlockSpec((tb, D_in), lambda i: (i, 0))]
    operands = [xp]
    for p in fused_params:
        d_in, h3 = p["w"].shape
        # Full-block, constant index_map: weights/biases stay VMEM-resident
        # across all batch grid steps (no re-DMA per step).
        in_specs.append(pl.BlockSpec((d_in, h3), lambda i: (0, 0)))
        in_specs.append(pl.BlockSpec((1, h3), lambda i: (0, 0)))
        operands.append(p["w"])
        operands.append(p["b"])

    out = pl.pallas_call(
        kernel,
        out_shape=jax.ShapeDtypeStruct((Bp, Hp_last), jnp.float32),
        grid=(Bp // tb,),
        in_specs=in_specs,
        out_specs=pl.BlockSpec((tb, Hp_last), lambda i: (i, 0)),
        compiler_params=pltpu.CompilerParams(
            dimension_semantics=("parallel",),
            vmem_limit_bytes=64 << 20,
        ),
    )(*operands)

    # Drop batch padding and the zero-valued per-gate lane padding.
    return out[:B, :H_last]


def init_lstm_params(key, input_length, units):
    """Deterministic parameter init mirroring nn.LSTM shapes/init.

    PyTorch nn.LSTM initializes uniformly in (-1/sqrt(H), 1/sqrt(H)); gate
    order along the 4H axis is i|f|g|o.
    """
    params = []
    d_in = input_length
    for H in units:
        k = 1.0 / math.sqrt(H)
        key, k1, k2, k3, k4 = jax.random.split(key, 5)
        params.append({
            "w_ih": jax.random.uniform(k1, (4 * H, d_in), jnp.float32, -k, k),
            "w_hh": jax.random.uniform(k2, (4 * H, H), jnp.float32, -k, k),
            "b_ih": jax.random.uniform(k3, (4 * H,), jnp.float32, -k, k),
            "b_hh": jax.random.uniform(k4, (4 * H,), jnp.float32, -k, k),
        })
        d_in = H
    return params


def prepare_fused_params(params, input_length):
    """One-time prep: transpose W_ih, fuse biases, drop the dead f gate and
    pad each surviving gate to a 128-lane-aligned slot.

    Output per layer: w (D_in_padded, 3*Hp) gate order i|g|o, b (1, 3*Hp),
    where Hp = round_up(H, 128) and D_in_padded is the previous layer's Hp
    (or the raw input length for layer 0). Padded rows/columns are zero, so
    the kernel's padded activations are exactly zero.
    Also returns the static tuple of un-padded hidden sizes.
    """
    fused = []
    hidden_sizes = []
    d_in_logical = input_length
    d_in_padded = input_length
    for p in params:
        H = p["w_ih"].shape[0] // 4
        Hp = _round_up(H, 128)
        w = jnp.zeros((d_in_padded, 3 * Hp), jnp.float32)
        b = jnp.zeros((1, 3 * Hp), jnp.float32)
        bias = (p["b_ih"] + p["b_hh"]).astype(jnp.float32)
        # PyTorch gate order is i|f|g|o; f multiplies c0 == 0, so drop it.
        for slot, g in enumerate((0, 2, 3)):               # i, g, o
            wg = jnp.transpose(
                p["w_ih"][g * H:(g + 1) * H, :]).astype(jnp.float32)
            w = w.at[:d_in_logical, slot * Hp:slot * Hp + H].set(wg)
            b = b.at[0, slot * Hp:slot * Hp + H].set(bias[g * H:(g + 1) * H])
        fused.append({"w": w, "b": b})
        hidden_sizes.append(H)
        d_in_logical = H
        d_in_padded = Hp
    return fused, tuple(hidden_sizes)


def _reference_forward(x, params):
    """Pure-JAX reference of the full PyTorch math (uses raw 4H params)."""
    h = x[:, 0, :].astype(jnp.float32)
    for p in params:
        H = p["w_hh"].shape[1]
        z = h @ p["w_ih"].T + p["b_ih"] + p["b_hh"]
        i_g = jax.nn.sigmoid(z[:, 0 * H:1 * H])
        g_g = jnp.tanh(z[:, 2 * H:3 * H])
        o_g = jax.nn.sigmoid(z[:, 3 * H:4 * H])
        h = o_g * jnp.tanh(i_g * g_g)
    return h


if __name__ == "__main__":
    # Module hyper-params (small, consistent with the forward contract).
    samples = 2
    input_length = 16      # length of each time series
    units = [32, 32]       # two recurrent blocks
    dropout = 0.2          # identity at inference

    key = jax.random.PRNGKey(0)
    key, xk = jax.random.split(key)
    x = jax.random.normal(xk, (samples, 1, input_length), jnp.float32)

    params = init_lstm_params(key, input_length, units)
    fused_params, hidden_sizes = prepare_fused_params(params, input_length)

    out = jax.block_until_ready(lstm_forward(x, fused_params, hidden_sizes))

    ref = _reference_forward(x, params)
    assert out.shape == (samples, units[-1])
    assert jnp.allclose(out, ref, atol=1e-5, rtol=1e-5)

    print("KERNEL_OK")
</pallas_src>

<mosaic_0001>
module attributes {stable_mosaic.version = 11 : i64} {
  func.func @kernel(%arg0: i32, %arg1: memref<8x16xf32, #tpu.memory_space<vmem>>, %arg2: memref<16x384xf32, #tpu.memory_space<vmem>>, %arg3: memref<1x384xf32, #tpu.memory_space<vmem>>, %arg4: memref<128x384xf32, #tpu.memory_space<vmem>>, %arg5: memref<1x384xf32, #tpu.memory_space<vmem>>, %arg6: memref<8x128xf32, #tpu.memory_space<vmem>>) attributes {dimension_semantics = [#tpu.dimension_semantics<parallel>], iteration_bounds = array<i64: 1>, scalar_prefetch = 0 : i64, scratch_operands = 0 : i64, tpu.core_type = #tpu.core_type<tc>, window_params = [{transform_indices = @transform_0, window_bounds = array<i64: 8, 16>}, {pipeline_mode = #tpu.pipeline_mode<synchronous>, transform_indices = @transform_1, window_bounds = array<i64: 16, 384>}, {pipeline_mode = #tpu.pipeline_mode<synchronous>, transform_indices = @transform_2, window_bounds = array<i64: 1, 384>}, {pipeline_mode = #tpu.pipeline_mode<synchronous>, transform_indices = @transform_3, window_bounds = array<i64: 128, 384>}, {pipeline_mode = #tpu.pipeline_mode<synchronous>, transform_indices = @transform_4, window_bounds = array<i64: 1, 384>}, {transform_indices = @transform_5, window_bounds = array<i64: 8, 128>}]} {
    %c0 = arith.constant 0 : index
    %c0_0 = arith.constant 0 : index
    %0 = vector.load %arg1[%c0, %c0_0] : memref<8x16xf32, #tpu.memory_space<vmem>>, vector<8x16xf32>
    %c0_1 = arith.constant 0 : index
    %c0_2 = arith.constant 0 : index
    %1 = vector.load %arg2[%c0_1, %c0_2] : memref<16x384xf32, #tpu.memory_space<vmem>>, vector<16x384xf32>
    %cst = arith.constant dense<0.000000e+00> : vector<8x384xf32>
    %2 = tpu.matmul %0, %1, %cst {dimension_numbers = #tpu.dot_dimension_numbers<[1], [0], [0], [1], [0, 0, 1, 1], [], []>} : vector<8x16xf32>, vector<16x384xf32>, vector<8x384xf32> -> vector<8x384xf32>
    %c0_3 = arith.constant 0 : index
    %c0_4 = arith.constant 0 : index
    %3 = vector.load %arg3[%c0_3, %c0_4] : memref<1x384xf32, #tpu.memory_space<vmem>>, vector<1x384xf32>
    %4 = vector.broadcast %3 : vector<1x384xf32> to vector<8x384xf32>
    %5 = arith.addf %2, %4 : vector<8x384xf32>
    %6 = vector.extract_strided_slice %5 {offsets = [0, 0], sizes = [8, 128], strides = [1, 1]} : vector<8x384xf32> to vector<8x128xf32>
    %7 = arith.negf %6 : vector<8x128xf32>
    %8 = math.exp %7 : vector<8x128xf32>
    %cst_5 = arith.constant 1.000000e+00 : f32
    %9 = vector.broadcast %cst_5 : f32 to vector<8x128xf32>
    %10 = arith.addf %9, %8 : vector<8x128xf32>
    %11 = arith.divf %9, %10 : vector<8x128xf32>
    %12 = vector.extract_strided_slice %5 {offsets = [0, 128], sizes = [8, 128], strides = [1, 1]} : vector<8x384xf32> to vector<8x128xf32>
    %13 = math.tanh %12 : vector<8x128xf32>
    %14 = vector.extract_strided_slice %5 {offsets = [0, 256], sizes = [8, 128], strides = [1, 1]} : vector<8x384xf32> to vector<8x128xf32>
    %15 = arith.negf %14 : vector<8x128xf32>
    %16 = math.exp %15 : vector<8x128xf32>
    %cst_6 = arith.constant 1.000000e+00 : f32
    %17 = vector.broadcast %cst_6 : f32 to vector<8x128xf32>
    %18 = arith.addf %17, %16 : vector<8x128xf32>
    %19 = arith.divf %17, %18 : vector<8x128xf32>
    %20 = arith.mulf %11, %13 : vector<8x128xf32>
    %21 = math.tanh %20 : vector<8x128xf32>
    %22 = arith.mulf %19, %21 : vector<8x128xf32>
    %c0_7 = arith.constant 0 : index
    %c0_8 = arith.constant 0 : index
    %23 = vector.load %arg4[%c0_7, %c0_8] : memref<128x384xf32, #tpu.memory_space<vmem>>, vector<128x384xf32>
    %cst_9 = arith.constant dense<0.000000e+00> : vector<8x384xf32>
    %24 = tpu.matmul %22, %23, %cst_9 {dimension_numbers = #tpu.dot_dimension_numbers<[1], [0], [0], [1], [0, 0, 1, 1], [], []>} : vector<8x128xf32>, vector<128x384xf32>, vector<8x384xf32> -> vector<8x384xf32>
    %c0_10 = arith.constant 0 : index
    %c0_11 = arith.constant 0 : index
    %25 = vector.load %arg5[%c0_10, %c0_11] : memref<1x384xf32, #tpu.memory_space<vmem>>, vector<1x384xf32>
    %26 = vector.broadcast %25 : vector<1x384xf32> to vector<8x384xf32>
    %27 = arith.addf %24, %26 : vector<8x384xf32>
    %28 = vector.extract_strided_slice %27 {offsets = [0, 0], sizes = [8, 128], strides = [1, 1]} : vector<8x384xf32> to vector<8x128xf32>
    %29 = arith.negf %28 : vector<8x128xf32>
    %30 = math.exp %29 : vector<8x128xf32>
    %cst_12 = arith.constant 1.000000e+00 : f32
    %31 = vector.broadcast %cst_12 : f32 to vector<8x128xf32>
    %32 = arith.addf %31, %30 : vector<8x128xf32>
    %33 = arith.divf %31, %32 : vector<8x128xf32>
    %34 = vector.extract_strided_slice %27 {offsets = [0, 128], sizes = [8, 128], strides = [1, 1]} : vector<8x384xf32> to vector<8x128xf32>
    %35 = math.tanh %34 : vector<8x128xf32>
    %36 = vector.extract_strided_slice %27 {offsets = [0, 256], sizes = [8, 128], strides = [1, 1]} : vector<8x384xf32> to vector<8x128xf32>
    %37 = arith.negf %36 : vector<8x128xf32>
    %38 = math.exp %37 : vector<8x128xf32>
    %cst_13 = arith.constant 1.000000e+00 : f32
    %39 = vector.broadcast %cst_13 : f32 to vector<8x128xf32>
    %40 = arith.addf %39, %38 : vector<8x128xf32>
    %41 = arith.divf %39, %40 : vector<8x128xf32>
    %42 = arith.mulf %33, %35 : vector<8x128xf32>
    %43 = math.tanh %42 : vector<8x128xf32>
    %44 = arith.mulf %41, %43 : vector<8x128xf32>
    %c0_14 = arith.constant 0 : index
    %c0_15 = arith.constant 0 : index
    %45 = vector.load %arg6[%c0_14, %c0_15] : memref<8x128xf32, #tpu.memory_space<vmem>>, vector<8x128xf32>
    tpu.vector_store %arg6[%c0_14, %c0_15], %44 {strides = array<i32>} : memref<8x128xf32, #tpu.memory_space<vmem>>, vector<8x128xf32>,
    return
  }
  func.func @transform_0(%arg0: i32) -> (i32, i32) {
    %c0_i32 = arith.constant 0 : i32
    %c0_i32_0 = arith.constant 0 : i32
    return %arg0, %c0_i32 : i32, i32
  }
  func.func @transform_1(%arg0: i32) -> (i32, i32) {
    %c0_i32 = arith.constant 0 : i32
    %c0_i32_0 = arith.constant 0 : i32
    %c0_i32_1 = arith.constant 0 : i32
    return %c0_i32, %c0_i32_0 : i32, i32
  }
  func.func @transform_2(%arg0: i32) -> (i32, i32) {
    %c0_i32 = arith.constant 0 : i32
    %c0_i32_0 = arith.constant 0 : i32
    %c0_i32_1 = arith.constant 0 : i32
    return %c0_i32, %c0_i32_0 : i32, i32
  }
  func.func @transform_3(%arg0: i32) -> (i32, i32) {
    %c0_i32 = arith.constant 0 : i32
    %c0_i32_0 = arith.constant 0 : i32
    %c0_i32_1 = arith.constant 0 : i32
    return %c0_i32, %c0_i32_0 : i32, i32
  }
  func.func @transform_4(%arg0: i32) -> (i32, i32) {
    %c0_i32 = arith.constant 0 : i32
    %c0_i32_0 = arith.constant 0 : i32
    %c0_i32_1 = arith.constant 0 : i32
    return %c0_i32, %c0_i32_0 : i32, i32
  }
  func.func @transform_5(%arg0: i32) -> (i32, i32) {
    %c0_i32 = arith.constant 0 : i32
    %c0_i32_0 = arith.constant 0 : i32
    return %arg0, %c0_i32 : i32, i32
  }
}

</mosaic_0001>

<llo_original>
// kernel: lstm_forward.1
$region0: #{lstm_forward.1}
  #allocation0 [shape = 'u32[]', space=smem, size = 0x4, offset = 0x4, fixed_abs, tag = 'smem constant byte address 0x4 - core index']
  #allocation1 [shape = 'u32[144,128]{1,0:T(1,128)}', space=vmem, size = 0x12000, scoped, tag = 'internal scratch']
  %s0 = inlined_call_operand.hbm [shape: f32[8,16], index: 0, kind: input, shape index: {}]
  %s1 = inlined_call_operand.hbm [shape: f32[16,384], index: 1, kind: input, shape index: {}]
  %s2 = inlined_call_operand.hbm [shape: f32[1,384], index: 2, kind: input, shape index: {}]
  %s3 = inlined_call_operand.hbm [shape: f32[128,384], index: 3, kind: input, shape index: {}]
  %s4 = inlined_call_operand.hbm [shape: f32[1,384], index: 4, kind: input, shape index: {}]
  %s5 = inlined_call_operand.hbm [shape: f32[8,128], index: 5, kind: output, shape index: {}]
  %s6 = sld [smem:[#allocation0]]
  $region50: #{lstm_forward.1} parent=0
    _
  %s8 = ssub.s32 1, %s6
  %s9 = scalar_select 0, %s8, %s6
  $region1: #{lstm_forward.1} parent=0
    #allocation2 [shape = 'u8[4096]{0}', space=vmem, size = 0x1000, scoped, tag = 'input window, operand 0, single buffered']
    #allocation3 [shape = 's32[1]{0}', space=sflag, size = 0x4, scoped, tag = 'scoped memory for lstm_forward.1']
    #allocation4 [shape = 's32[1]{0}', space=sflag, size = 0x4, scoped, tag = 'scoped memory for lstm_forward.1']
    #allocation5 [shape = 'u8[24576]{0}', space=vmem, size = 0x6000, scoped, tag = 'input window, operand 1, single buffered']
    #allocation6 [shape = 's32[1]{0}', space=sflag, size = 0x4, scoped, tag = 'scoped memory for lstm_forward.1']
    #allocation7 [shape = 'u8[1536]{0}', space=vmem, size = 0x800, scoped, tag = 'input window, operand 2, single buffered']
    #allocation8 [shape = 'u8[196608]{0}', space=vmem, size = 0x30000, scoped, tag = 'input window, operand 3, single buffered']
    #allocation9 [shape = 's32[1]{0}', space=sflag, size = 0x4, scoped, tag = 'scoped memory for lstm_forward.1']
    #allocation10 [shape = 'u8[1536]{0}', space=vmem, size = 0x800, scoped, tag = 'input window, operand 4, single buffered']
    #allocation11 [shape = 'u8[4096]{0}', space=vmem, size = 0x1000, scoped, tag = 'output window, operand 0, single buffered']
    %10 = vsyncpa [#allocation3], 0
    %11 = vsyncpa [#allocation6], 0
    %12 = vsyncpa [#allocation9], 0
    %13 = vsyncpa [#allocation4], 0
    // Predicated region
    $region2: #{lstm_forward.1} parent=1 // pred_check
      _
    $region3: #{lstm_forward.1} parent=1 // pred_check_branch
      %15 = sbr.rel (0) target = $region5
    $region4: #{lstm_forward.1} parent=1 // pred_region
      %s17 = ssub.s32 128, 128
      %18 = vsyncadd [#allocation3], %s17
      %s20 = sshll.u32 [#allocation2], 4
      %s21 = int_to_ptr.vmem [resolvable:$true] %s20
      %23 = dma.hbm_to_vmem [thread:$0]  %s0, 128, %s21, [#allocation3]
    $region5: #{lstm_forward.1} parent=1 // pred_fallthru
      _
    // Predicated region
    $region6: #{lstm_forward.1} parent=1 // pred_check
      _
    $region7: #{lstm_forward.1} parent=1 // pred_check_branch
      %25 = sbr.rel (0) target = $region9
    $region8: #{lstm_forward.1} parent=1 // pred_region
      %s27 = ssub.s32 768, 768
      %28 = vsyncadd [#allocation6], %s27
      %s29 = sshll.u32 [#allocation5], 4
      %s30 = int_to_ptr.vmem [resolvable:$true] %s29
      %35 = dma.hbm_to_vmem [thread:$0]  %s1, 768, %s30, [#allocation6], 384, 384, 24
    $region9: #{lstm_forward.1} parent=1 // pred_fallthru
      _
    // Predicated region
    $region10: #{lstm_forward.1} parent=1 // pred_check
      _
    $region11: #{lstm_forward.1} parent=1 // pred_check_branch
      %37 = sbr.rel (0) target = $region13
    $region12: #{lstm_forward.1} parent=1 // pred_region
      %s39 = ssub.s32 48, 48
      %40 = vsyncadd [#allocation6], %s39
      %s42 = sshll.u32 [#allocation7], 4
      %s43 = int_to_ptr.vmem [resolvable:$true] %s42
      %45 = dma.hbm_to_vmem [thread:$0]  %s2, 48, %s43, [#allocation6]
    $region13: #{lstm_forward.1} parent=1 // pred_fallthru
      _
    // Predicated region
    $region14: #{lstm_forward.1} parent=1 // pred_check
      _
    $region15: #{lstm_forward.1} parent=1 // pred_check_branch
      %47 = sbr.rel (0) target = $region17
    $region16: #{lstm_forward.1} parent=1 // pred_region
      %s49 = ssub.s32 6144, 6144
      %50 = vsyncadd [#allocation9], %s49
      %s51 = sshll.u32 [#allocation8], 4
      %s52 = int_to_ptr.vmem [resolvable:$true] %s51
      %57 = dma.hbm_to_vmem [thread:$0]  %s3, 6144, %s52, [#allocation9], 384, 384, 24
    $region17: #{lstm_forward.1} parent=1 // pred_fallthru
      _
    // Predicated region
    $region18: #{lstm_forward.1} parent=1 // pred_check
      _
    $region19: #{lstm_forward.1} parent=1 // pred_check_branch
      %59 = sbr.rel (0) target = $region21
    $region20: #{lstm_forward.1} parent=1 // pred_region
      %s61 = ssub.s32 48, 48
      %62 = vsyncadd [#allocation9], %s61
      %s64 = sshll.u32 [#allocation10], 4
      %s65 = int_to_ptr.vmem [resolvable:$true] %s64
      %67 = dma.hbm_to_vmem [thread:$0]  %s4, 48, %s65, [#allocation9]
    $region21: #{lstm_forward.1} parent=1 // pred_fallthru
      _
    // Predicated region
    $region22: #{lstm_forward.1} parent=1 // pred_check
      _
    $region23: #{lstm_forward.1} parent=1 // pred_check_branch
      %69 = sbr.rel (0) target = $region25
    $region24: #{lstm_forward.1} parent=1 // pred_region
      %70 = dma.done [#allocation3], 128
    $region25: #{lstm_forward.1} parent=1 // pred_fallthru
      _
    // Predicated region
    $region26: #{lstm_forward.1} parent=1 // pred_check
      _
    $region27: #{lstm_forward.1} parent=1 // pred_check_branch
      %72 = sbr.rel (0) target = $region29
    $region28: #{lstm_forward.1} parent=1 // pred_region
      %73 = dma.done [#allocation6], 768
    $region29: #{lstm_forward.1} parent=1 // pred_fallthru
      _
    // Predicated region
    $region30: #{lstm_forward.1} parent=1 // pred_check
      _
    $region31: #{lstm_forward.1} parent=1 // pred_check_branch
      %75 = sbr.rel (0) target = $region33
    $region32: #{lstm_forward.1} parent=1 // pred_region
      %76 = dma.done [#allocation6], 48
    $region33: #{lstm_forward.1} parent=1 // pred_fallthru
      _
    // Predicated region
    $region34: #{lstm_forward.1} parent=1 // pred_check
      _
    $region35: #{lstm_forward.1} parent=1 // pred_check_branch
      %78 = sbr.rel (0) target = $region37
    $region36: #{lstm_forward.1} parent=1 // pred_region
      %79 = dma.done [#allocation9], 6144
    $region37: #{lstm_forward.1} parent=1 // pred_fallthru
      _
    // Predicated region
    $region38: #{lstm_forward.1} parent=1 // pred_check
      _
    $region39: #{lstm_forward.1} parent=1 // pred_check_branch
      %81 = sbr.rel (0) target = $region41
    $region40: #{lstm_forward.1} parent=1 // pred_region
      %82 = dma.done [#allocation9], 48
    $region41: #{lstm_forward.1} parent=1 // pred_fallthru
      _
    %v83 = vld [vmem:[#allocation2] sm:$0xff]
    %v84 = vld [vmem:[#allocation5] sm:$0xff]
    %v85 = vld [vmem:[#allocation5 + $0x8] sm:$0xff]
    %v86 = vld [vmem:[#allocation5 + $0x10] sm:$0xff]
    %v87 = vld [vmem:[#allocation5 + $0x18] sm:$0xff]
    %v88 = vld [vmem:[#allocation5 + $0x20] sm:$0xff]
    %v89 = vld [vmem:[#allocation5 + $0x28] sm:$0xff]
    %v90 = vld [vmem:[#allocation7] sm:$0x7]
    %v92 = vlaneseq
    %v93 = vshrl.u32 %v92, 7
    %v94 = vsub.s32 0, %v93
    %v95 = vrot.slane %v90, %v94
    %v96 = vlaneseq
    %v97 = vshrl.u32 %v96, 7
    %v98 = vsub.s32 1, %v97
    %v99 = vrot.slane %v90, %v98
    %v100 = vlaneseq
    %v101 = vshrl.u32 %v100, 7
    %v102 = vsub.s32 2, %v101
    %v103 = vrot.slane %v90, %v102
    %vm107 = vcmask 130048
    %v109 = vsel %vm107, %v83, 0
    %111 = vmatprep.subr.mxu0 %v85
    %112 = vmatpush1.msra.mxu0 %v84
    %113 = vmatprep.subr.mxu0 %v88
    %114 = vmatpush1.msra.mxu0 %v87
    %115 = vmatprep.subr.mxu0 0.0
    %116 = vmatpush1.msra.mxu0 0.0
    %117 = vmatprep.subr.mxu0 0.0
    %118 = vmatpush1.msra.mxu0 0.0
    %119 = vmatprep.subr.mxu0 0.0
    %120 = vmatpush1.msra.mxu0 0.0
    %121 = vmatprep.subr.mxu0 0.0
    %122 = vmatpush1.msra.mxu0 0.0
    %123 = vmatprep.subr.mxu0 0.0
    %124 = vmatpush1.msra.mxu0 0.0
    %125 = vmatprep.subr.mxu0 0.0
    %126 = vmatpush1.msra.mxu0 0.0
    %127 = vmatprep.subr.mxu0 0.0
    %128 = vmatpush1.msra.mxu0 0.0
    %129 = vmatprep.subr.mxu0 0.0
    %130 = vmatpush1.msra.mxu0 0.0
    %131 = vmatprep.subr.mxu0 0.0
    %132 = vmatpush1.msra.mxu0 0.0
    %133 = vmatprep.subr.mxu0 0.0
    %134 = vmatpush1.msra.mxu0 0.0
    %135 = vmatprep.subr.mxu0 0.0
    %136 = vmatpush1.msra.mxu0 0.0
    %137 = vmatprep.subr.mxu0 0.0
    %138 = vmatpush1.msra.mxu0 0.0
    %139 = vmatprep.subr.mxu0 0.0
    %140 = vmatpush1.msra.mxu0 0.0
    %141 = vmatprep.subr.mxu0 0.0
    %142 = vmatpush1.msra.mxu0 0.0
    %143 = vmatprep.subr.mxu0 0.0
    %144 = vmatpush1.msra.mxu0 0.0
    %145 = vmatprep.subr.mxu0 0.0
    %146 = vmatpush1.msra.mxu0 0.0
    %147 = vmatprep.subr.mxu0 0.0
    %148 = vmatpush1.msra.mxu0 0.0
    %149 = vmatprep.subr.mxu0 0.0
    %150 = vmatpush1.msra.mxu0 0.0
    %151 = vmatprep.subr.mxu0 0.0
    %152 = vmatpush1.msra.mxu0 0.0
    %153 = vmatprep.subr.mxu0 0.0
    %154 = vmatpush1.msra.mxu0 0.0
    %155 = vmatprep.subr.mxu0 0.0
    %156 = vmatpush1.msra.mxu0 0.0
    %157 = vmatprep.subr.mxu0 0.0
    %158 = vmatpush1.msra.mxu0 0.0
    %159 = vmatprep.subr.mxu0 0.0
    %160 = vmatpush1.msra.mxu0 0.0
    %161 = vmatprep.subr.mxu0 0.0
    %162 = vmatpush1.msra.mxu0 0.0
    %163 = vmatprep.subr.mxu0 0.0
    %164 = vmatpush1.msra.mxu0 0.0
    %165 = vmatprep.subr.mxu0 0.0
    %166 = vmatpush1.msra.mxu0 0.0
    %167 = vmatprep.subr.mxu0 0.0
    %168 = vmatpush1.msra.mxu0 0.0
    %169 = vmatprep.subr.mxu0 0.0
    %170 = vmatpush1.msra.mxu0 0.0
    %171 = vmatprep.subr.mxu0 0.0
    %172 = vmatpush1.msra.mxu0 0.0
    %173 = vmatprep.subr.mxu0 0.0
    %174 = vmatpush1.msra.mxu0 0.0
    %175 = vmatprep.mubr.f32.mxu0 0.0
    %176 = vmatmul.mubr.f32.gmra.mrb[0].mxu0 %v109
    %v177 = vpop.f32.mrb[0].mxu0
    %v178 = vadd.f32 %v95, %v177
    %v179 = vpop.f32.mrb[0].mxu0
    %v180 = vadd.f32 %v99, %v179
    %181 = vdwg.mxu0
    %182 = vmatprep.subr.mxu0 0.0
    %183 = vmatpush1.msra.mxu0 %v86
    %184 = vmatprep.subr.mxu0 0.0
    %185 = vmatpush1.msra.mxu0 %v89
    %186 = vmatprep.subr.mxu0 0.0
    %187 = vmatpush1.msra.mxu0 0.0
    %188 = vmatprep.subr.mxu0 0.0
    %189 = vmatpush1.msra.mxu0 0.0
    %190 = vmatprep.subr.mxu0 0.0
    %191 = vmatpush1.msra.mxu0 0.0
    %192 = vmatprep.subr.mxu0 0.0
    %193 = vmatpush1.msra.mxu0 0.0
    %194 = vmatprep.subr.mxu0 0.0
    %195 = vmatpush1.msra.mxu0 0.0
    %196 = vmatprep.subr.mxu0 0.0
    %197 = vmatpush1.msra.mxu0 0.0
    %198 = vmatprep.subr.mxu0 0.0
    %199 = vmatpush1.msra.mxu0 0.0
    %200 = vmatprep.subr.mxu0 0.0
    %201 = vmatpush1.msra.mxu0 0.0
    %202 = vmatprep.subr.mxu0 0.0
    %203 = vmatpush1.msra.mxu0 0.0
    %204 = vmatprep.subr.mxu0 0.0
    %205 = vmatpush1.msra.mxu0 0.0
    %206 = vmatprep.subr.mxu0 0.0
    %207 = vmatpush1.msra.mxu0 0.0
    %208 = vmatprep.subr.mxu0 0.0
    %209 = vmatpush1.msra.mxu0 0.0
    %210 = vmatprep.subr.mxu0 0.0
    %211 = vmatpush1.msra.mxu0 0.0
    %212 = vmatprep.subr.mxu0 0.0
    %213 = vmatpush1.msra.mxu0 0.0
    %214 = vmatprep.subr.mxu0 0.0
    %215 = vmatpush1.msra.mxu0 0.0
    %216 = vmatprep.subr.mxu0 0.0
    %217 = vmatpush1.msra.mxu0 0.0
    %218 = vmatprep.subr.mxu0 0.0
    %219 = vmatpush1.msra.mxu0 0.0
    %220 = vmatprep.subr.mxu0 0.0
    %221 = vmatpush1.msra.mxu0 0.0
    %222 = vmatprep.subr.mxu0 0.0
    %223 = vmatpush1.msra.mxu0 0.0
    %224 = vmatprep.subr.mxu0 0.0
    %225 = vmatpush1.msra.mxu0 0.0
    %226 = vmatprep.subr.mxu0 0.0
    %227 = vmatpush1.msra.mxu0 0.0
    %228 = vmatprep.subr.mxu0 0.0
    %229 = vmatpush1.msra.mxu0 0.0
    %230 = vmatprep.subr.mxu0 0.0
    %231 = vmatpush1.msra.mxu0 0.0
    %232 = vmatprep.subr.mxu0 0.0
    %233 = vmatpush1.msra.mxu0 0.0
    %234 = vmatprep.subr.mxu0 0.0
    %235 = vmatpush1.msra.mxu0 0.0
    %236 = vmatprep.subr.mxu0 0.0
    %237 = vmatpush1.msra.mxu0 0.0
    %238 = vmatprep.subr.mxu0 0.0
    %239 = vmatpush1.msra.mxu0 0.0
    %240 = vmatprep.subr.mxu0 0.0
    %241 = vmatpush1.msra.mxu0 0.0
    %242 = vmatprep.subr.mxu0 0.0
    %243 = vmatpush1.msra.mxu0 0.0
    %244 = vmatprep.subr.mxu0 0.0
    %245 = vmatpush1.msra.mxu0 0.0
    %246 = vmatprep.mubr.f32.mxu0 0.0
    %247 = vmatmul.mubr.f32.gmra.mrb[0].mxu0 %v109
    %v248 = vpop.f32.mrb[0].mxu0
    %v249 = vadd.f32 %v103, %v248
    %v250 = vpop.f32.mrb[0].mxu0
    %251 = vdwg.mxu0
    %v252 = vxor.u32 %v178, 2147483648
    %v253 = vmul.f32 %v252, 1.442695
    %v254 = vpow.pop %v253
    %v255 = vadd.f32 %v254, 1.0
    %v256 = vrcp.pop %v255
    %v257 = vmul.f32 1.0, %v256
    %v258 = vtanh.pop %v180
    %v259 = vxor.u32 %v249, 2147483648
    %v260 = vmul.f32 %v259, 1.442695
    %v261 = vpow.pop %v260
    %v262 = vadd.f32 %v261, 1.0
    %v263 = vrcp.pop %v262
    %v264 = vmul.f32 1.0, %v263
    %v265 = vmul.f32 %v257, %v258
    %v266 = vtanh.pop %v265
    %v267 = vmul.f32 %v264, %v266
    %v268 = vld [vmem:[#allocation8] sm:$0xff]
    %v269 = vld [vmem:[#allocation8 + $0x8] sm:$0xff]
    %v270 = vld [vmem:[#allocation8 + $0x10] sm:$0xff]
    %v271 = vld [vmem:[#allocation8 + $0x18] sm:$0xff]
    %v272 = vld [vmem:[#allocation8 + $0x20] sm:$0xff]
    %v273 = vld [vmem:[#allocation8 + $0x28] sm:$0xff]
    %v274 = vld [vmem:[#allocation8 + $0x30] sm:$0xff]
    %v275 = vld [vmem:[#allocation8 + $0x38] sm:$0xff]
    %v276 = vld [vmem:[#allocation8 + $0x40] sm:$0xff]
    %v277 = vld [vmem:[#allocation8 + $0x48] sm:$0xff]
    %v278 = vld [vmem:[#allocation8 + $0x50] sm:$0xff]
    %v279 = vld [vmem:[#allocation8 + $0x58] sm:$0xff]
    %v280 = vld [vmem:[#allocation8 + $0x60] sm:$0xff]
    %v281 = vld [vmem:[#allocation8 + $0x68] sm:$0xff]
    %v282 = vld [vmem:[#allocation8 + $0x70] sm:$0xff]
    %v283 = vld [vmem:[#allocation8 + $0x78] sm:$0xff]
    %v284 = vld [vmem:[#allocation8 + $0x80] sm:$0xff]
    %v285 = vld [vmem:[#allocation8 + $0x88] sm:$0xff]
    %v286 = vld [vmem:[#allocation8 + $0x90] sm:$0xff]
    %v287 = vld [vmem:[#allocation8 + $0x98] sm:$0xff]
    %v288 = vld [vmem:[#allocation8 + $0xa0] sm:$0xff]
    %v289 = vld [vmem:[#allocation8 + $0xa8] sm:$0xff]
    %v290 = vld [vmem:[#allocation8 + $0xb0] sm:$0xff]
    %v291 = vld [vmem:[#allocation8 + $0xb8] sm:$0xff]
    %v292 = vld [vmem:[#allocation8 + $0xc0] sm:$0xff]
    %v293 = vld [vmem:[#allocation8 + $0xc8] sm:$0xff]
    %v294 = vld [vmem:[#allocation8 + $0xd0] sm:$0xff]
    %v295 = vld [vmem:[#allocation8 + $0xd8] sm:$0xff]
    %v296 = vld [vmem:[#allocation8 + $0xe0] sm:$0xff]
    %v297 = vld [vmem:[#allocation8 + $0xe8] sm:$0xff]
    %v298 = vld [vmem:[#allocation8 + $0xf0] sm:$0xff]
    %v299 = vld [vmem:[#allocation8 + $0xf8] sm:$0xff]
    %v300 = vld [vmem:[#allocation8 + $0x100] sm:$0xff]
    %v301 = vld [vmem:[#allocation8 + $0x108] sm:$0xff]
    %v302 = vld [vmem:[#allocation8 + $0x110] sm:$0xff]
    %v303 = vld [vmem:[#allocation8 + $0x118] sm:$0xff]
    %v304 = vld [vmem:[#allocation8 + $0x120] sm:$0xff]
    %v305 = vld [vmem:[#allocation8 + $0x128] sm:$0xff]
    %v306 = vld [vmem:[#allocation8 + $0x130] sm:$0xff]
    %v307 = vld [vmem:[#allocation8 + $0x138] sm:$0xff]
    %v308 = vld [vmem:[#allocation8 + $0x140] sm:$0xff]
    %v309 = vld [vmem:[#allocation8 + $0x148] sm:$0xff]
    %v310 = vld [vmem:[#allocation8 + $0x150] sm:$0xff]
    %v311 = vld [vmem:[#allocation8 + $0x158] sm:$0xff]
    %v312 = vld [vmem:[#allocation8 + $0x160] sm:$0xff]
    %v313 = vld [vmem:[#allocation8 + $0x168] sm:$0xff]
    %v314 = vld [vmem:[#allocation8 + $0x170] sm:$0xff]
    %v315 = vld [vmem:[#allocation8 + $0x178] sm:$0xff]
    %v316 = vld [vmem:[#allocation10] sm:$0x7]
    %v318 = vlaneseq
    %v319 = vshrl.u32 %v318, 7
    %v320 = vsub.s32 0, %v319
    %v321 = vrot.slane %v316, %v320
    %v322 = vlaneseq
    %v323 = vshrl.u32 %v322, 7
    %v324 = vsub.s32 1, %v323
    %v325 = vrot.slane %v316, %v324
    %v326 = vlaneseq
    %v327 = vshrl.u32 %v326, 7
    %v328 = vsub.s32 2, %v327
    %v329 = vrot.slane %v316, %v328
    %333 = vmatprep.subr.mxu0 %v269
    %334 = vmatpush1.msra.mxu0 %v268
    %335 = vmatprep.subr.mxu0 %v272
    %336 = vmatpush1.msra.mxu0 %v271
    %337 = vmatprep.subr.mxu0 %v275
    %338 = vmatpush1.msra.mxu0 %v274
    %339 = vmatprep.subr.mxu0 %v278
    %340 = vmatpush1.msra.mxu0 %v277
    %341 = vmatprep.subr.mxu0 %v281
    %342 = vmatpush1.msra.mxu0 %v280
    %343 = vmatprep.subr.mxu0 %v284
    %344 = vmatpush1.msra.mxu0 %v283
    %345 = vmatprep.subr.mxu0 %v287
    %346 = vmatpush1.msra.mxu0 %v286
    %347 = vmatprep.subr.mxu0 %v290
    %348 = vmatpush1.msra.mxu0 %v289
    %349 = vmatprep.subr.mxu0 %v293
    %350 = vmatpush1.msra.mxu0 %v292
    %351 = vmatprep.subr.mxu0 %v296
    %352 = vmatpush1.msra.mxu0 %v295
    %353 = vmatprep.subr.mxu0 %v299
    %354 = vmatpush1.msra.mxu0 %v298
    %355 = vmatprep.subr.mxu0 %v302
    %356 = vmatpush1.msra.mxu0 %v301
    %357 = vmatprep.subr.mxu0 %v305
    %358 = vmatpush1.msra.mxu0 %v304
    %359 = vmatprep.subr.mxu0 %v308
    %360 = vmatpush1.msra.mxu0 %v307
    %361 = vmatprep.subr.mxu0 %v311
    %362 = vmatpush1.msra.mxu0 %v310
    %363 = vmatprep.subr.mxu0 %v314
    %364 = vmatpush1.msra.mxu0 %v313
    %365 = vmatprep.subr.mxu0 0.0
    %366 = vmatpush1.msra.mxu0 0.0
    %367 = vmatprep.subr.mxu0 0.0
    %368 = vmatpush1.msra.mxu0 0.0
    %369 = vmatprep.subr.mxu0 0.0
    %370 = vmatpush1.msra.mxu0 0.0
    %371 = vmatprep.subr.mxu0 0.0
    %372 = vmatpush1.msra.mxu0 0.0
    %373 = vmatprep.subr.mxu0 0.0
    %374 = vmatpush1.msra.mxu0 0.0
    %375 = vmatprep.subr.mxu0 0.0
    %376 = vmatpush1.msra.mxu0 0.0
    %377 = vmatprep.subr.mxu0 0.0
    %378 = vmatpush1.msra.mxu0 0.0
    %379 = vmatprep.subr.mxu0 0.0
    %380 = vmatpush1.msra.mxu0 0.0
    %381 = vmatprep.subr.mxu0 0.0
    %382 = vmatpush1.msra.mxu0 0.0
    %383 = vmatprep.subr.mxu0 0.0
    %384 = vmatpush1.msra.mxu0 0.0
    %385 = vmatprep.subr.mxu0 0.0
    %386 = vmatpush1.msra.mxu0 0.0
    %387 = vmatprep.subr.mxu0 0.0
    %388 = vmatpush1.msra.mxu0 0.0
    %389 = vmatprep.subr.mxu0 0.0
    %390 = vmatpush1.msra.mxu0 0.0
    %391 = vmatprep.subr.mxu0 0.0
    %392 = vmatpush1.msra.mxu0 0.0
    %393 = vmatprep.subr.mxu0 0.0
    %394 = vmatpush1.msra.mxu0 0.0
    %395 = vmatprep.subr.mxu0 0.0
    %396 = vmatpush1.msra.mxu0 0.0
    %397 = vmatprep.mubr.f32.mxu0 0.0
    %398 = vmatmul.mubr.f32.gmra.mrb[0].mxu0 %v267
    %v399 = vpop.f32.mrb[0].mxu0
    %v400 = vadd.f32 %v321, %v399
    %v401 = vpop.f32.mrb[0].mxu0
    %v402 = vadd.f32 %v325, %v401
    %403 = vdwg.mxu0
    %404 = vmatprep.subr.mxu0 0.0
    %405 = vmatpush1.msra.mxu0 %v270
    %406 = vmatprep.subr.mxu0 0.0
    %407 = vmatpush1.msra.mxu0 %v273
    %408 = vmatprep.subr.mxu0 0.0
    %409 = vmatpush1.msra.mxu0 %v276
    %410 = vmatprep.subr.mxu0 0.0
    %411 = vmatpush1.msra.mxu0 %v279
    %412 = vmatprep.subr.mxu0 0.0
    %413 = vmatpush1.msra.mxu0 %v282
    %414 = vmatprep.subr.mxu0 0.0
    %415 = vmatpush1.msra.mxu0 %v285
    %416 = vmatprep.subr.mxu0 0.0
    %417 = vmatpush1.msra.mxu0 %v288
    %418 = vmatprep.subr.mxu0 0.0
    %419 = vmatpush1.msra.mxu0 %v291
    %420 = vmatprep.subr.mxu0 0.0
    %421 = vmatpush1.msra.mxu0 %v294
    %422 = vmatprep.subr.mxu0 0.0
    %423 = vmatpush1.msra.mxu0 %v297
    %424 = vmatprep.subr.mxu0 0.0
    %425 = vmatpush1.msra.mxu0 %v300
    %426 = vmatprep.subr.mxu0 0.0
    %427 = vmatpush1.msra.mxu0 %v303
    %428 = vmatprep.subr.mxu0 0.0
    %429 = vmatpush1.msra.mxu0 %v306
    %430 = vmatprep.subr.mxu0 0.0
    %431 = vmatpush1.msra.mxu0 %v309
    %432 = vmatprep.subr.mxu0 0.0
    %433 = vmatpush1.msra.mxu0 %v312
    %434 = vmatprep.subr.mxu0 0.0
    %435 = vmatpush1.msra.mxu0 %v315
    %436 = vmatprep.subr.mxu0 0.0
    %437 = vmatpush1.msra.mxu0 0.0
    %438 = vmatprep.subr.mxu0 0.0
    %439 = vmatpush1.msra.mxu0 0.0
    %440 = vmatprep.subr.mxu0 0.0
    %441 = vmatpush1.msra.mxu0 0.0
    %442 = vmatprep.subr.mxu0 0.0
    %443 = vmatpush1.msra.mxu0 0.0
    %444 = vmatprep.subr.mxu0 0.0
    %445 = vmatpush1.msra.mxu0 0.0
    %446 = vmatprep.subr.mxu0 0.0
    %447 = vmatpush1.msra.mxu0 0.0
    %448 = vmatprep.subr.mxu0 0.0
    %449 = vmatpush1.msra.mxu0 0.0
    %450 = vmatprep.subr.mxu0 0.0
    %451 = vmatpush1.msra.mxu0 0.0
    %452 = vmatprep.subr.mxu0 0.0
    %453 = vmatpush1.msra.mxu0 0.0
    %454 = vmatprep.subr.mxu0 0.0
    %455 = vmatpush1.msra.mxu0 0.0
    %456 = vmatprep.subr.mxu0 0.0
    %457 = vmatpush1.msra.mxu0 0.0
    %458 = vmatprep.subr.mxu0 0.0
    %459 = vmatpush1.msra.mxu0 0.0
    %460 = vmatprep.subr.mxu0 0.0
    %461 = vmatpush1.msra.mxu0 0.0
    %462 = vmatprep.subr.mxu0 0.0
    %463 = vmatpush1.msra.mxu0 0.0
    %464 = vmatprep.subr.mxu0 0.0
    %465 = vmatpush1.msra.mxu0 0.0
    %466 = vmatprep.subr.mxu0 0.0
    %467 = vmatpush1.msra.mxu0 0.0
    %468 = vmatprep.mubr.f32.mxu0 0.0
    %469 = vmatmul.mubr.f32.gmra.mrb[0].mxu0 %v267
    %v470 = vpop.f32.mrb[0].mxu0
    %v471 = vadd.f32 %v329, %v470
    %v472 = vpop.f32.mrb[0].mxu0
    %473 = vdwg.mxu0
    %v474 = vxor.u32 %v400, 2147483648
    %v475 = vmul.f32 %v474, 1.442695
    %v476 = vpow.pop %v475
    %v477 = vadd.f32 %v476, 1.0
    %v478 = vrcp.pop %v477
    %v479 = vmul.f32 1.0, %v478
    %v480 = vtanh.pop %v402
    %v481 = vxor.u32 %v471, 2147483648
    %v482 = vmul.f32 %v481, 1.442695
    %v483 = vpow.pop %v482
    %v484 = vadd.f32 %v483, 1.0
    %v485 = vrcp.pop %v484
    %v486 = vmul.f32 1.0, %v485
    %v487 = vmul.f32 %v479, %v480
    %v488 = vtanh.pop %v487
    %v489 = vmul.f32 %v486, %v488
    %490 = vst [vmem:[#allocation11] sm:$0xff] %v489
    // Predicated region
    $region42: #{lstm_forward.1} parent=1 // pred_check
      _
    $region43: #{lstm_forward.1} parent=1 // pred_check_branch
      %492 = sbr.rel (0) target = $region45
    $region44: #{lstm_forward.1} parent=1 // pred_region
      %s494 = ssub.s32 128, 128
      %495 = vsyncadd [#allocation4], %s494
      %s497 = sshll.u32 [#allocation11], 4
      %s498 = int_to_ptr.vmem [resolvable:$true] %s497
      %500 = dma.vmem_to_hbm [thread:$0]  %s498, 128, %s5, [#allocation4]
    $region45: #{lstm_forward.1} parent=1 // pred_fallthru
      _
    // Predicated region
    $region46: #{lstm_forward.1} parent=1 // pred_check
      _
    $region47: #{lstm_forward.1} parent=1 // pred_check_branch
      %502 = sbr.rel (0) target = $region49
    $region48: #{lstm_forward.1} parent=1 // pred_region
      %503 = dma.done [#allocation4], 128
    $region49: #{lstm_forward.1} parent=1 // pred_fallthru
      _
    %504 = vsyncpa [#allocation3], 1
    %505 = vsyncpa [#allocation6], 1
    %506 = vsyncpa [#allocation9], 1
    %507 = vsyncpa [#allocation4], 1

</llo_original>
